<compile_context>
chip_gen: v6e
topology: v6e:2x2x1
jax: 0.10.0
libtpu: 0.0.40
codegen_flags: <defaults>
</compile_context>

<pallas_src>
import functools

import jax
import jax.numpy as jnp
from jax.experimental import pallas as pl
from jax.experimental.pallas import tpu as pltpu

BN_EPS = 1e-5


def _round_up(n, m):
    return (n + m - 1) // m * m


# ----------------------------- kernels -----------------------------

def _layer1_kernel(x_ref, w1_ref, h_ref, s_ref, ss_ref):
    # Linear bias b1 is intentionally dropped: training-mode BN cancels it.
    h = jnp.dot(x_ref[...], w1_ref[...], preferred_element_type=jnp.float32)
    h_ref[...] = h.astype(h_ref.dtype)
    s_ref[...] = jnp.sum(h, axis=0, keepdims=True)[None]          # (1, 1, hid1)
    ss_ref[...] = jnp.sum(h * h, axis=0, keepdims=True)[None]


def _layer2_kernel(h1_ref, scale_ref, shift_ref, w2_ref, h_ref, s_ref, ss_ref,
                   *, n_valid, tile_n, need_mask):
    # Fused BN (folded scale/shift) + ReLU, then Linear 2 (bias b2 dropped, BN cancels it).
    h1 = jnp.maximum(h1_ref[...].astype(jnp.float32) * scale_ref[...] + shift_ref[...], 0.0)
    if need_mask:
        # Keep zero-padded rows out of layer-2 batch statistics.
        row = pl.program_id(0) * tile_n + jax.lax.broadcasted_iota(jnp.int32, h1.shape, 0)
        h1 = jnp.where(row < n_valid, h1, 0.0)
    h = jnp.dot(h1.astype(w2_ref.dtype), w2_ref[...], preferred_element_type=jnp.float32)
    h_ref[...] = h.astype(h_ref.dtype)
    s_ref[...] = jnp.sum(h, axis=0, keepdims=True)[None]
    ss_ref[...] = jnp.sum(h * h, axis=0, keepdims=True)[None]


def _layer3_kernel(h2_ref, scale_ref, shift_ref, w3t_ref, b3_ref, o_ref):
    # Fused BN + ReLU, then Linear 3 + sigmoid. Output produced lane-dense as
    # (out_feats, TILE_N) so stores fill full 128-lane vregs instead of (N, 1).
    h2 = jnp.maximum(h2_ref[...].astype(jnp.float32) * scale_ref[...] + shift_ref[...], 0.0)
    h3 = jax.lax.dot_general(
        w3t_ref[...], h2.astype(w3t_ref.dtype),
        dimension_numbers=(((1,), (1,)), ((), ())),
        preferred_element_type=jnp.float32)                        # (out_feats, TILE_N)
    o_ref[...] = jax.nn.sigmoid(h3 + b3_ref[...])


# ----------------------------- wrapper -----------------------------

def mlp_forward(x, params, in_feats, *, use_bf16=False, max_tile_n=512):
    """Forward pass matching the PyTorch MLP (training-mode BatchNorm, eps=1e-5)."""
    x2d = x.reshape(-1, in_feats).astype(jnp.float32)
    N = x2d.shape[0]
    hid1 = params["w1"].shape[1]
    hid2 = params["w2"].shape[1]
    out_feats = params["w3"].shape[1]

    io_dtype = jnp.bfloat16 if use_bf16 else jnp.float32
    tile_n = max_tile_n if N >= max_tile_n else _round_up(N, 8)
    n_pad = _round_up(N, tile_n)
    num_tiles = n_pad // tile_n
    need_mask = (n_pad != N)
    if need_mask:
        x2d = jnp.pad(x2d, ((0, n_pad - N), (0, 0)))               # zero rows -> 0 contribution

    xk = x2d.astype(io_dtype)
    w1 = params["w1"].astype(io_dtype)
    w2 = params["w2"].astype(io_dtype)
    w3t = params["w3"].T.astype(io_dtype)                          # (out_feats, hid2)
    b3 = params["b3"].reshape(out_feats, 1).astype(jnp.float32)

    cparams = pltpu.CompilerParams(dimension_semantics=("parallel",))

    def resident(shape):
        zeros = (0,) * len(shape)
        return pl.BlockSpec(shape, lambda i: zeros)

    def stats_out(hid):
        return (jax.ShapeDtypeStruct((num_tiles, 1, hid), jnp.float32),
                pl.BlockSpec((1, 1, hid), lambda i: (i, 0, 0)))

    def bn_scale_shift(s, ss, gamma, beta):
        mean = s.sum(axis=0) / N                                   # (1, hid)
        var = jnp.maximum(ss.sum(axis=0) / N - mean * mean, 0.0)   # single-pass, clamped
        scale = gamma * jax.lax.rsqrt(var + BN_EPS)
        shift = beta - mean * scale
        return scale.astype(jnp.float32), shift.astype(jnp.float32)

    # ---- layer 1: x @ W1, per-tile partial sums for BN1 ----
    s1_shape, s1_spec = stats_out(hid1)
    h1_pre, s1, ss1 = pl.pallas_call(
        _layer1_kernel,
        grid=(num_tiles,),
        out_shape=(jax.ShapeDtypeStruct((n_pad, hid1), io_dtype), s1_shape, s1_shape),
        in_specs=[pl.BlockSpec((tile_n, in_feats), lambda i: (i, 0)),
                  resident((in_feats, hid1))],
        out_specs=(pl.BlockSpec((tile_n, hid1), lambda i: (i, 0)), s1_spec, s1_spec),
        compiler_params=cparams,
    )(xk, w1)
    scale1, shift1 = bn_scale_shift(s1, ss1, params["g1"], params["be1"])

    # ---- layer 2: BN1+ReLU fused, then @ W2, partial sums for BN2 ----
    s2_shape, s2_spec = stats_out(hid2)
    layer2 = functools.partial(_layer2_kernel, n_valid=N, tile_n=tile_n, need_mask=need_mask)
    h2_pre, s2, ss2 = pl.pallas_call(
        layer2,
        grid=(num_tiles,),
        out_shape=(jax.ShapeDtypeStruct((n_pad, hid2), io_dtype), s2_shape, s2_shape),
        in_specs=[pl.BlockSpec((tile_n, hid1), lambda i: (i, 0)),
                  resident((1, hid1)),
                  resident((1, hid1)),
                  resident((hid1, hid2))],
        out_specs=(pl.BlockSpec((tile_n, hid2), lambda i: (i, 0)), s2_spec, s2_spec),
        compiler_params=cparams,
    )(h1_pre, scale1, shift1, w2)
    scale2, shift2 = bn_scale_shift(s2, ss2, params["g2"], params["be2"])

    # ---- layer 3: BN2+ReLU fused, @ W3 + b3, sigmoid (lane-dense output) ----
    out_ln = pl.pallas_call(
        _layer3_kernel,
        grid=(num_tiles,),
        out_shape=jax.ShapeDtypeStruct((out_feats, n_pad), jnp.float32),
        in_specs=[pl.BlockSpec((tile_n, hid2), lambda i: (i, 0)),
                  resident((1, hid2)),
                  resident((1, hid2)),
                  resident((out_feats, hid2)),
                  resident((out_feats, 1))],
        out_specs=pl.BlockSpec((out_feats, tile_n), lambda i: (0, i)),
        compiler_params=cparams,
    )(h2_pre, scale2, shift2, w3t, b3)

    out = out_ln[:, :N]
    # PyTorch: out.squeeze(-1) on an (N, out_feats) tensor.
    return out[0] if out_feats == 1 else out.T


# ----------------------------- params / reference -----------------------------

def init_params(key, in_feats, hid1, hid2, out_feats):
    """Deterministic synthetic init matching nn.Linear / nn.BatchNorm1d shapes."""
    ks = jax.random.split(key, 6)

    def linear(kw, kb, fan_in, fan_out):
        bound = 1.0 / jnp.sqrt(fan_in)
        w = jax.random.uniform(kw, (fan_in, fan_out), jnp.float32, -bound, bound)
        b = jax.random.uniform(kb, (1, fan_out), jnp.float32, -bound, bound)
        return w, b

    w1, b1 = linear(ks[0], ks[1], in_feats, hid1)
    w2, b2 = linear(ks[2], ks[3], hid1, hid2)
    w3, b3 = linear(ks[4], ks[5], hid2, out_feats)
    return dict(
        w1=w1, b1=b1, g1=jnp.ones((1, hid1), jnp.float32), be1=jnp.zeros((1, hid1), jnp.float32),
        w2=w2, b2=b2, g2=jnp.ones((1, hid2), jnp.float32), be2=jnp.zeros((1, hid2), jnp.float32),
        w3=w3, b3=b3,
    )


def _reference(x, params, in_feats):
    """Pure-JAX reference mirroring the PyTorch forward (biases included, two-pass var)."""
    x = x.reshape(-1, in_feats).astype(jnp.float32)
    h = x @ params["w1"] + params["b1"]
    m, v = jnp.mean(h, 0, keepdims=True), jnp.var(h, 0, keepdims=True)
    h = jnp.maximum((h - m) / jnp.sqrt(v + BN_EPS) * params["g1"] + params["be1"], 0.0)
    h = h @ params["w2"] + params["b2"]
    m, v = jnp.mean(h, 0, keepdims=True), jnp.var(h, 0, keepdims=True)
    h = jnp.maximum((h - m) / jnp.sqrt(v + BN_EPS) * params["g2"] + params["be2"], 0.0)
    h = jax.nn.sigmoid(h @ params["w3"] + params["b3"])
    return jnp.squeeze(h, -1)


if __name__ == "__main__":
    in_feats, hid1, hid2, out_feats = 16, 32, 32, 1
    key = jax.random.PRNGKey(0)
    kx, kp, kx2 = jax.random.split(key, 3)

    # x: (2, 4, 16) -> flattened inside forward to (8, 16)
    x = jax.random.normal(kx, (2, 4, in_feats), jnp.float32)
    params = init_params(kp, in_feats, hid1, hid2, out_feats)

    out = jax.block_until_ready(mlp_forward(x, params, in_feats))
    ref = _reference(x, params, in_feats)
    assert out.shape == (8,), out.shape
    assert jnp.allclose(out, ref, atol=5e-5, rtol=1e-5), (out, ref)

    # Non-multiple-of-8 batch exercises the padded / masked-stats path.
    x_odd = jax.random.normal(kx2, (3, 5, in_feats), jnp.float32)
    out_odd = jax.block_until_ready(mlp_forward(x_odd, params, in_feats))
    ref_odd = _reference(x_odd, params, in_feats)
    assert out_odd.shape == (15,), out_odd.shape
    assert jnp.allclose(out_odd, ref_odd, atol=5e-5, rtol=1e-5), (out_odd, ref_odd)

    # bf16 I/O path (weights/streamed activations bf16, BN & sigmoid in f32): looser check.
    out_bf16 = jax.block_until_ready(mlp_forward(x, params, in_feats, use_bf16=True))
    assert out_bf16.shape == (8,)
    assert jnp.allclose(out_bf16, ref, atol=1e-1), (out_bf16, ref)

    print("KERNEL_OK")
</pallas_src>

<mosaic_0001>
module attributes {stable_mosaic.version = 11 : i64} {
  func.func @_layer1_kernel(%arg0: i32, %arg1: memref<8x16xf32, #tpu.memory_space<vmem>>, %arg2: memref<16x32xf32, #tpu.memory_space<vmem>>, %arg3: memref<8x32xf32, #tpu.memory_space<vmem>>, %arg4: memref<1x1x32xf32, #tpu.memory_space<vmem>>, %arg5: memref<1x1x32xf32, #tpu.memory_space<vmem>>) attributes {dimension_semantics = [#tpu.dimension_semantics<parallel>], iteration_bounds = array<i64: 1>, scalar_prefetch = 0 : i64, scratch_operands = 0 : i64, tpu.core_type = #tpu.core_type<tc>, window_params = [{transform_indices = @transform_0, window_bounds = array<i64: 8, 16>}, {pipeline_mode = #tpu.pipeline_mode<synchronous>, transform_indices = @transform_1, window_bounds = array<i64: 16, 32>}, {transform_indices = @transform_2, window_bounds = array<i64: 8, 32>}, {transform_indices = @transform_3, window_bounds = array<i64: 1, 1, 32>}, {transform_indices = @transform_4, window_bounds = array<i64: 1, 1, 32>}]} {
    %c0 = arith.constant 0 : index
    %c0_0 = arith.constant 0 : index
    %0 = vector.load %arg1[%c0, %c0_0] : memref<8x16xf32, #tpu.memory_space<vmem>>, vector<8x16xf32>
    %c0_1 = arith.constant 0 : index
    %c0_2 = arith.constant 0 : index
    %1 = vector.load %arg2[%c0_1, %c0_2] : memref<16x32xf32, #tpu.memory_space<vmem>>, vector<16x32xf32>
    %cst = arith.constant dense<0.000000e+00> : vector<8x32xf32>
    %2 = tpu.matmul %0, %1, %cst {dimension_numbers = #tpu.dot_dimension_numbers<[1], [0], [0], [1], [0, 0, 1, 1], [], []>} : vector<8x16xf32>, vector<16x32xf32>, vector<8x32xf32> -> vector<8x32xf32>
    %c0_3 = arith.constant 0 : index
    %c0_4 = arith.constant 0 : index
    %3 = vector.load %arg3[%c0_3, %c0_4] : memref<8x32xf32, #tpu.memory_space<vmem>>, vector<8x32xf32>
    tpu.vector_store %arg3[%c0_3, %c0_4], %2 {strides = array<i32>} : memref<8x32xf32, #tpu.memory_space<vmem>>, vector<8x32xf32>,
    %cst_5 = arith.constant dense<0.000000e+00> : vector<32xf32>
    %4 = vector.multi_reduction <add>, %2, %cst_5 [0] : vector<8x32xf32> to vector<32xf32>
    %5 = vector.shape_cast %4 : vector<32xf32> to vector<1x32xf32>
    %6 = vector.shape_cast %5 : vector<1x32xf32> to vector<1x1x32xf32>
    %c0_6 = arith.constant 0 : index
    %c0_7 = arith.constant 0 : index
    %c0_8 = arith.constant 0 : index
    %7 = vector.load %arg4[%c0_6, %c0_7, %c0_8] : memref<1x1x32xf32, #tpu.memory_space<vmem>>, vector<1x1x32xf32>
    tpu.vector_store %arg4[%c0_6, %c0_7, %c0_8], %6 {strides = array<i32>} : memref<1x1x32xf32, #tpu.memory_space<vmem>>, vector<1x1x32xf32>,
    %8 = arith.mulf %2, %2 : vector<8x32xf32>
    %cst_9 = arith.constant dense<0.000000e+00> : vector<32xf32>
    %9 = vector.multi_reduction <add>, %8, %cst_9 [0] : vector<8x32xf32> to vector<32xf32>
    %10 = vector.shape_cast %9 : vector<32xf32> to vector<1x32xf32>
    %11 = vector.shape_cast %10 : vector<1x32xf32> to vector<1x1x32xf32>
    %c0_10 = arith.constant 0 : index
    %c0_11 = arith.constant 0 : index
    %c0_12 = arith.constant 0 : index
    %12 = vector.load %arg5[%c0_10, %c0_11, %c0_12] : memref<1x1x32xf32, #tpu.memory_space<vmem>>, vector<1x1x32xf32>
    tpu.vector_store %arg5[%c0_10, %c0_11, %c0_12], %11 {strides = array<i32>} : memref<1x1x32xf32, #tpu.memory_space<vmem>>, vector<1x1x32xf32>,
    return
  }
  func.func @transform_0(%arg0: i32) -> (i32, i32) {
    %c0_i32 = arith.constant 0 : i32
    %c0_i32_0 = arith.constant 0 : i32
    return %arg0, %c0_i32 : i32, i32
  }
  func.func @transform_1(%arg0: i32) -> (i32, i32) {
    %c0_i32 = arith.constant 0 : i32
    %c0_i32_0 = arith.constant 0 : i32
    %c0_i32_1 = arith.constant 0 : i32
    return %c0_i32, %c0_i32_0 : i32, i32
  }
  func.func @transform_2(%arg0: i32) -> (i32, i32) {
    %c0_i32 = arith.constant 0 : i32
    %c0_i32_0 = arith.constant 0 : i32
    return %arg0, %c0_i32 : i32, i32
  }
  func.func @transform_3(%arg0: i32) -> (i32, i32, i32) {
    %c0_i32 = arith.constant 0 : i32
    %c0_i32_0 = arith.constant 0 : i32
    %c0_i32_1 = arith.constant 0 : i32
    return %arg0, %c0_i32, %c0_i32_0 : i32, i32, i32
  }
  func.func @transform_4(%arg0: i32) -> (i32, i32, i32) {
    %c0_i32 = arith.constant 0 : i32
    %c0_i32_0 = arith.constant 0 : i32
    %c0_i32_1 = arith.constant 0 : i32
    return %arg0, %c0_i32, %c0_i32_0 : i32, i32, i32
  }
}

</mosaic_0001>

<llo_original>
// kernel: tpu_custom_call.1
$region0: #{tpu_custom_call.1}
  #allocation0 [shape = 'u32[]', space=smem, size = 0x4, offset = 0x4, fixed_abs, tag = 'smem constant byte address 0x4 - core index']
  #allocation1 [shape = 'u32[144,128]{1,0:T(1,128)}', space=vmem, size = 0x12000, scoped, tag = 'internal scratch']
  %s0 = inlined_call_operand.hbm [shape: f32[8,16], index: 0, kind: input, shape index: {}]
  %s1 = inlined_call_operand.hbm [shape: f32[16,32], index: 1, kind: input, shape index: {}]
  %s2 = inlined_call_operand.hbm [shape: f32[8,32], index: 2, kind: output, shape index: {0}]
  %s3 = inlined_call_operand.hbm [shape: f32[1,1,32], index: 3, kind: output, shape index: {1}]
  %s4 = inlined_call_operand.hbm [shape: f32[1,1,32], index: 4, kind: output, shape index: {2}]
  %5 = xla_tuple %s2, %s3, %s4
  %s6 = sld [smem:[#allocation0]]
  $region42: #{tpu_custom_call.1} parent=0
    _
  %s8 = ssub.s32 1, %s6
  %s9 = scalar_select 0, %s8, %s6
  $region1: #{tpu_custom_call.1} parent=0
    #allocation2 [shape = 'u8[4096]{0}', space=vmem, size = 0x1000, scoped, tag = 'input window, operand 0, single buffered']
    #allocation3 [shape = 's32[1]{0}', space=sflag, size = 0x4, scoped, tag = 'scoped memory for tpu_custom_call.1']
    #allocation4 [shape = 's32[1]{0}', space=sflag, size = 0x4, scoped, tag = 'scoped memory for tpu_custom_call.1']
    #allocation5 [shape = 'u8[8192]{0}', space=vmem, size = 0x2000, scoped, tag = 'input window, operand 1, single buffered']
    #allocation6 [shape = 's32[1]{0}', space=sflag, size = 0x4, scoped, tag = 'scoped memory for tpu_custom_call.1']
    #allocation7 [shape = 'u8[4096]{0}', space=vmem, size = 0x1000, scoped, tag = 'output window, operand 0, single buffered']
    #allocation8 [shape = 'u8[512]{0}', space=vmem, size = 0x400, scoped, tag = 'output window, operand 1, single buffered']
    #allocation9 [shape = 's32[1]{0}', space=sflag, size = 0x4, scoped, tag = 'scoped memory for tpu_custom_call.1']
    #allocation10 [shape = 'u8[512]{0}', space=vmem, size = 0x400, scoped, tag = 'output window, operand 2, single buffered']
    %10 = vsyncpa [#allocation3], 0
    %11 = vsyncpa [#allocation6], 0
    %12 = vsyncpa [#allocation4], 0
    %13 = vsyncpa [#allocation9], 0
    // Predicated region
    $region2: #{tpu_custom_call.1} parent=1 // pred_check
      _
    $region3: #{tpu_custom_call.1} parent=1 // pred_check_branch
      %15 = sbr.rel (0) target = $region5
    $region4: #{tpu_custom_call.1} parent=1 // pred_region
      %s17 = ssub.s32 128, 128
      %18 = vsyncadd [#allocation3], %s17
      %s20 = sshll.u32 [#allocation2], 4
      %s21 = int_to_ptr.vmem [resolvable:$true] %s20
      %23 = dma.hbm_to_vmem [thread:$0]  %s0, 128, %s21, [#allocation3]
    $region5: #{tpu_custom_call.1} parent=1 // pred_fallthru
      _
    // Predicated region
    $region6: #{tpu_custom_call.1} parent=1 // pred_check
      _
    $region7: #{tpu_custom_call.1} parent=1 // pred_check_branch
      %25 = sbr.rel (0) target = $region9
    $region8: #{tpu_custom_call.1} parent=1 // pred_region
      %s27 = ssub.s32 256, 256
      %28 = vsyncadd [#allocation6], %s27
      %s29 = sshll.u32 [#allocation5], 4
      %s30 = int_to_ptr.vmem [resolvable:$true] %s29
      %35 = dma.hbm_to_vmem [thread:$0]  %s1, 256, %s30, [#allocation6], 128, 128, 8
    $region9: #{tpu_custom_call.1} parent=1 // pred_fallthru
      _
    // Predicated region
    $region10: #{tpu_custom_call.1} parent=1 // pred_check
      _
    $region11: #{tpu_custom_call.1} parent=1 // pred_check_branch
      %37 = sbr.rel (0) target = $region13
    $region12: #{tpu_custom_call.1} parent=1 // pred_region
      %38 = dma.done [#allocation3], 128
    $region13: #{tpu_custom_call.1} parent=1 // pred_fallthru
      _
    // Predicated region
    $region14: #{tpu_custom_call.1} parent=1 // pred_check
      _
    $region15: #{tpu_custom_call.1} parent=1 // pred_check_branch
      %40 = sbr.rel (0) target = $region17
    $region16: #{tpu_custom_call.1} parent=1 // pred_region
      %41 = dma.done [#allocation6], 256
    $region17: #{tpu_custom_call.1} parent=1 // pred_fallthru
      _
    %v42 = vld [vmem:[#allocation2] sm:$0xff]
    %v43 = vld [vmem:[#allocation5] sm:$0xff]
    %v44 = vld [vmem:[#allocation5 + $0x8] sm:$0xff]
    %vm45 = vcmask 130048
    %v47 = vsel %vm45, %v42, 0
    %49 = vmatprep.subr.mxu0 0.0
    %50 = vmatpush1.msra.mxu0 0.0
    %51 = vmatprep.subr.mxu0 0.0
    %52 = vmatpush1.msra.mxu0 0.0
    %53 = vmatprep.subr.mxu0 0.0
    %54 = vmatpush1.msra.mxu0 0.0
    %55 = vmatprep.subr.mxu0 0.0
    %56 = vmatpush1.msra.mxu0 0.0
    %57 = vmatprep.subr.mxu0 0.0
    %58 = vmatpush1.msra.mxu0 0.0
    %59 = vmatprep.subr.mxu0 0.0
    %60 = vmatpush1.msra.mxu0 0.0
    %61 = vmatprep.subr.mxu0 0.0
    %62 = vmatpush1.msra.mxu0 0.0
    %63 = vmatprep.subr.mxu0 0.0
    %64 = vmatpush1.msra.mxu0 0.0
    %65 = vmatprep.subr.mxu0 0.0
    %66 = vmatpush1.msra.mxu0 0.0
    %67 = vmatprep.subr.mxu0 0.0
    %68 = vmatpush1.msra.mxu0 0.0
    %69 = vmatprep.subr.mxu0 0.0
    %70 = vmatpush1.msra.mxu0 0.0
    %71 = vmatprep.subr.mxu0 0.0
    %72 = vmatpush1.msra.mxu0 0.0
    %73 = vmatprep.subr.mxu0 0.0
    %74 = vmatpush1.msra.mxu0 0.0
    %75 = vmatprep.subr.mxu0 0.0
    %76 = vmatpush1.msra.mxu0 0.0
    %77 = vmatprep.subr.mxu0 0.0
    %78 = vmatpush1.msra.mxu0 %v44
    %79 = vmatprep.subr.mxu0 0.0
    %80 = vmatpush1.msra.mxu0 %v43
    %81 = vmatprep.subr.mxu0 0.0
    %82 = vmatpush2.msra.mxu0 0.0
    %83 = vmatprep.subr.mxu0 0.0
    %84 = vmatpush2.msra.mxu0 0.0
    %85 = vmatprep.subr.mxu0 0.0
    %86 = vmatpush2.msra.mxu0 0.0
    %87 = vmatprep.subr.mxu0 0.0
    %88 = vmatpush2.msra.mxu0 0.0
    %89 = vmatprep.subr.mxu0 0.0
    %90 = vmatpush2.msra.mxu0 0.0
    %91 = vmatprep.subr.mxu0 0.0
    %92 = vmatpush2.msra.mxu0 0.0
    %93 = vmatprep.subr.mxu0 0.0
    %94 = vmatpush2.msra.mxu0 0.0
    %95 = vmatprep.subr.mxu0 0.0
    %96 = vmatpush2.msra.mxu0 0.0
    %97 = vmatprep.subr.mxu0 0.0
    %98 = vmatpush2.msra.mxu0 0.0
    %99 = vmatprep.subr.mxu0 0.0
    %100 = vmatpush2.msra.mxu0 0.0
    %101 = vmatprep.subr.mxu0 0.0
    %102 = vmatpush2.msra.mxu0 0.0
    %103 = vmatprep.subr.mxu0 0.0
    %104 = vmatpush2.msra.mxu0 0.0
    %105 = vmatprep.subr.mxu0 0.0
    %106 = vmatpush2.msra.mxu0 0.0
    %107 = vmatprep.subr.mxu0 0.0
    %108 = vmatpush2.msra.mxu0 0.0
    %109 = vmatprep.subr.mxu0 0.0
    %110 = vmatpush2.msra.mxu0 0.0
    %111 = vmatprep.subr.mxu0 0.0
    %112 = vmatpush2.msra.mxu0 0.0
    %113 = vmatprep.mubr.f32.mxu0 0.0
    %114 = vmatmul.mubr.f32.gmra.mxu0 %v47
    %v115 = vpop.f32.mrf.mxu0
    %v116 = vadd.f32 0.0, %v115
    %v117 = vpop.f32.mrf.mxu0
    %118 = vdwg.mxu0
    %vm119 = vcmask 261120
    %120 = vst.msk [vmem:[#allocation7] sm:$0xff] %vm119, %v116
    %v121 = vsel %vm119, %v116, 0.0
    %v122 = vrot.slane %v121, 4
    %v123 = vadd.f32 %v121, %v122
    %v124 = vrot.slane %v123, 2
    %v125 = vadd.f32 %v123, %v124
    %v126 = vrot.slane %v125, 1
    %v127 = vadd.f32 %v125, %v126
    %vm128 = vcmask 253952
    %129 = vst.msk [vmem:[#allocation8] sm:$0x1] %vm128, %v127
    %v130 = vmul.f32 %v116, %v116
    %v131 = vsel %vm119, %v130, 0.0
    %v132 = vrot.slane %v131, 4
    %v133 = vadd.f32 %v131, %v132
    %v134 = vrot.slane %v133, 2
    %v135 = vadd.f32 %v133, %v134
    %v136 = vrot.slane %v135, 1
    %v137 = vadd.f32 %v135, %v136
    %138 = vst.msk [vmem:[#allocation10] sm:$0x1] %vm128, %v137
    // Predicated region
    $region18: #{tpu_custom_call.1} parent=1 // pred_check
      _
    $region19: #{tpu_custom_call.1} parent=1 // pred_check_branch
      %140 = sbr.rel (0) target = $region21
    $region20: #{tpu_custom_call.1} parent=1 // pred_region
      %s142 = ssub.s32 128, 128
      %143 = vsyncadd [#allocation4], %s142
      %s145 = sshll.u32 [#allocation7], 4
      %s146 = int_to_ptr.vmem [resolvable:$true] %s145
      %148 = dma.vmem_to_hbm [thread:$0]  %s146, 128, %s2, [#allocation4]
    $region21: #{tpu_custom_call.1} parent=1 // pred_fallthru
      _
    // Predicated region
    $region22: #{tpu_custom_call.1} parent=1 // pred_check
      _
    $region23: #{tpu_custom_call.1} parent=1 // pred_check_branch
      %150 = sbr.rel (0) target = $region25
    $region24: #{tpu_custom_call.1} parent=1 // pred_region
      %s152 = ssub.s32 16, 16
      %153 = vsyncadd [#allocation9], %s152
      %s155 = sshll.u32 [#allocation8], 4
      %s156 = int_to_ptr.vmem [resolvable:$true] %s155
      %158 = dma.vmem_to_hbm [thread:$0]  %s156, 16, %s3, [#allocation9]
    $region25: #{tpu_custom_call.1} parent=1 // pred_fallthru
      _
    // Predicated region
    $region26: #{tpu_custom_call.1} parent=1 // pred_check
      _
    $region27: #{tpu_custom_call.1} parent=1 // pred_check_branch
      %160 = sbr.rel (0) target = $region29
    $region28: #{tpu_custom_call.1} parent=1 // pred_region
      %s162 = ssub.s32 16, 16
      %163 = vsyncadd [#allocation9], %s162
      %s165 = sshll.u32 [#allocation10], 4
      %s166 = int_to_ptr.vmem [resolvable:$true] %s165
      %168 = dma.vmem_to_hbm [thread:$0]  %s166, 16, %s4, [#allocation9]
    $region29: #{tpu_custom_call.1} parent=1 // pred_fallthru
      _
    // Predicated region
    $region30: #{tpu_custom_call.1} parent=1 // pred_check
      _
    $region31: #{tpu_custom_call.1} parent=1 // pred_check_branch
      %170 = sbr.rel (0) target = $region33
    $region32: #{tpu_custom_call.1} parent=1 // pred_region
      %171 = dma.done [#allocation4], 128
    $region33: #{tpu_custom_call.1} parent=1 // pred_fallthru
      _
    // Predicated region
    $region34: #{tpu_custom_call.1} parent=1 // pred_check
      _
    $region35: #{tpu_custom_call.1} parent=1 // pred_check_branch
      %173 = sbr.rel (0) target = $region37
    $region36: #{tpu_custom_call.1} parent=1 // pred_region
      %174 = dma.done [#allocation9], 16
    $region37: #{tpu_custom_call.1} parent=1 // pred_fallthru
      _
    // Predicated region
    $region38: #{tpu_custom_call.1} parent=1 // pred_check
      _
    $region39: #{tpu_custom_call.1} parent=1 // pred_check_branch
      %176 = sbr.rel (0) target = $region41
    $region40: #{tpu_custom_call.1} parent=1 // pred_region
      %177 = dma.done [#allocation9], 16
    $region41: #{tpu_custom_call.1} parent=1 // pred_fallthru
      _
    %178 = vsyncpa [#allocation3], 1
    %179 = vsyncpa [#allocation6], 1
    %180 = vsyncpa [#allocation4], 1
    %181 = vsyncpa [#allocation9], 1

</llo_original>
